<compile_context>
chip_gen: v7x
topology: tpu7x:2x2x1
jax: 0.10.0
libtpu: 0.0.40
codegen_flags: <defaults>
</compile_context>

<pallas_src>
import functools
import math

import jax
import jax.numpy as jnp
import numpy as np
from jax import lax
from jax.experimental import pallas as pl
from jax.experimental.pallas import tpu as pltpu


# ---------------------------------------------------------------------------
# Kernel A: fused QKV projection.
#   Reads a channel-major slab (1, C, tp), casts to bf16 *before* the in-kernel
#   transpose (half the XLU bytes), runs one x @ W_qkv matmul (bf16 in, f32 acc),
#   folds the 1/sqrt(C) softmax scale into q, and also emits the token-major
#   bf16 x tile as the residual for the attention kernel.
# ---------------------------------------------------------------------------
def _qkv_proj_kernel(x_ref, w_ref, b_ref, q_ref, k_ref, v_ref, xres_ref):
    x_bf = x_ref[0].astype(jnp.bfloat16)          # (C, tp) channel-major, bf16
    xt = x_bf.T                                   # (tp, C) token-major (bf16 transpose)
    C = xt.shape[-1]
    qkv = jnp.dot(xt, w_ref[...],                 # (tp, 3C) f32 accumulate
                  preferred_element_type=jnp.float32) + b_ref[...]
    scale = 1.0 / math.sqrt(float(C))
    # Fold softmax scale into q in f32, before the bf16 cast.
    q_ref[0] = (qkv[:, :C] * scale).astype(jnp.bfloat16)
    k_ref[0] = qkv[:, C:2 * C].astype(jnp.bfloat16)
    v_ref[0] = qkv[:, 2 * C:].astype(jnp.bfloat16)
    xres_ref[0] = xt                              # token-major residual (bf16)


# ---------------------------------------------------------------------------
# Kernel B: flash attention (resident K/V) + out_proj + residual.
#   Grid = (B, S//tq).  K/V are full-sequence VMEM blocks (single-buffered,
#   re-DMA'd only when the batch index changes).  The kv dimension is an
#   in-kernel pl.loop over pl.ds chunks with online softmax in f32 scratch.
#   Finalize: normalize, out_proj (bf16 MXU, f32 acc), bias + residual,
#   token-major lane-dense store.
# ---------------------------------------------------------------------------
def _flash_attn_kernel(xres_ref, q_ref, k_ref, v_ref, wo_ref, bo_ref, o_ref,
                       m_sc, l_sc, acc_sc, *, tk):
    q = q_ref[0]                                  # (tq, C) bf16, already scaled

    m_sc[...] = jnp.full(m_sc.shape, -jnp.inf, dtype=jnp.float32)
    l_sc[...] = jnp.zeros(l_sc.shape, dtype=jnp.float32)
    acc_sc[...] = jnp.zeros(acc_sc.shape, dtype=jnp.float32)

    n_kv = k_ref.shape[1] // tk

    @pl.loop(0, n_kv)
    def _(j):
        off = pl.multiple_of(j * tk, tk)
        k = k_ref[0, pl.ds(off, tk), :]           # (tk, C) bf16, VMEM-resident
        v = v_ref[0, pl.ds(off, tk), :]           # (tk, C) bf16, VMEM-resident

        # q @ k^T without materializing k.T: contract last dims of both operands.
        s = lax.dot_general(q, k, (((1,), (1,)), ((), ())),
                            preferred_element_type=jnp.float32)       # (tq, tk) f32

        m_prev = m_sc[...]
        m_new = jnp.maximum(m_prev, jnp.max(s, axis=-1, keepdims=True))
        alpha = jnp.exp(m_prev - m_new)
        p = jnp.exp(s - m_new)                                        # (tq, tk) f32
        l_sc[...] = alpha * l_sc[...] + jnp.sum(p, axis=-1, keepdims=True)
        acc_sc[...] = alpha * acc_sc[...] + jnp.dot(
            p.astype(jnp.bfloat16), v, preferred_element_type=jnp.float32)
        m_sc[...] = m_new

    inv_l = pl.reciprocal(l_sc[...], approx=True)                     # EUP slot
    attn = (acc_sc[...] * inv_l).astype(jnp.bfloat16)                 # (tq, C)
    out = jnp.dot(attn, wo_ref[...],
                  preferred_element_type=jnp.float32) + bo_ref[...]   # (tq, C) f32
    # Token-major, lane-dense store; residual is the token-major bf16 x tile.
    o_ref[0] = (out + xres_ref[0].astype(jnp.float32)).astype(o_ref.dtype)


# ---------------------------------------------------------------------------
# Wrapper
# ---------------------------------------------------------------------------
def _pick_tile(s, cap=512):
    """Largest tile <= cap that divides s and is a multiple of 128, else full s."""
    if s <= cap:
        return s
    t = (cap // 128) * 128
    while t >= 128:
        if s % t == 0:
            return t
        t -= 128
    return s


def _const_spec(block_shape, index_map):
    """BlockSpec for constant-index / per-batch blocks; single-buffered when supported."""
    if hasattr(pl, "Buffered"):
        try:
            return pl.BlockSpec(block_shape, index_map, pipeline_mode=pl.Buffered(1))
        except TypeError:
            pass
    return pl.BlockSpec(block_shape, index_map)


def vae_attention_block(x_nchw, params, *, max_tile=512):
    """x_nchw: (B, C, H, W) float32. Returns (B, C, H, W)."""
    B, C, H, W = x_nchw.shape
    S = H * W
    x_cs = x_nchw.reshape(B, C, S)               # free reshape, stays channel-major

    tp = tq = _pick_tile(S, max_tile)            # token / q tile
    tk = _pick_tile(S, max_tile)                 # in-kernel kv chunk

    w_qkv = params["w_qkv"].astype(jnp.bfloat16)            # (C, 3C)
    b_qkv = params["b_qkv"].astype(jnp.float32).reshape(1, 3 * C)
    wo = params["wo"].astype(jnp.bfloat16)                  # (C, C)
    bo = params["bo"].astype(jnp.float32).reshape(1, C)

    # ---- Kernel A: fused QKV projection (+ token-major residual) --------------------
    q, k, v, xres = pl.pallas_call(
        _qkv_proj_kernel,
        out_shape=tuple(jax.ShapeDtypeStruct((B, S, C), jnp.bfloat16) for _ in range(4)),
        grid_spec=pltpu.PrefetchScalarGridSpec(
            num_scalar_prefetch=0,
            grid=(B, S // tp),
            in_specs=[
                pl.BlockSpec((1, C, tp), lambda b, i: (b, 0, i)),        # x (ch-major)
                _const_spec((C, 3 * C), lambda b, i: (0, 0)),            # w_qkv
                _const_spec((1, 3 * C), lambda b, i: (0, 0)),            # b_qkv
            ],
            out_specs=[
                pl.BlockSpec((1, tp, C), lambda b, i: (b, i, 0)),        # q (scaled)
                pl.BlockSpec((1, tp, C), lambda b, i: (b, i, 0)),        # k
                pl.BlockSpec((1, tp, C), lambda b, i: (b, i, 0)),        # v
                pl.BlockSpec((1, tp, C), lambda b, i: (b, i, 0)),        # residual
            ],
        ),
        compiler_params=pltpu.CompilerParams(
            dimension_semantics=("parallel", "parallel"),
            vmem_limit_bytes=32 * 1024 * 1024),
    )(x_cs, w_qkv, b_qkv)

    # ---- Kernel B: flash attention (resident K/V) + out_proj + residual -------------
    y_tok = pl.pallas_call(
        functools.partial(_flash_attn_kernel, tk=tk),
        out_shape=jax.ShapeDtypeStruct((B, S, C), x_nchw.dtype),
        grid_spec=pltpu.PrefetchScalarGridSpec(
            num_scalar_prefetch=0,
            grid=(B, S // tq),
            in_specs=[
                pl.BlockSpec((1, tq, C), lambda b, i: (b, i, 0)),        # residual
                pl.BlockSpec((1, tq, C), lambda b, i: (b, i, 0)),        # q
                _const_spec((1, S, C), lambda b, i: (b, 0, 0)),          # K (resident)
                _const_spec((1, S, C), lambda b, i: (b, 0, 0)),          # V (resident)
                _const_spec((C, C), lambda b, i: (0, 0)),                # wo
                _const_spec((1, C), lambda b, i: (0, 0)),                # bo
            ],
            out_specs=pl.BlockSpec((1, tq, C), lambda b, i: (b, i, 0)),  # token-major
            scratch_shapes=[
                pltpu.VMEM((tq, 1), jnp.float32),   # running max m
                pltpu.VMEM((tq, 1), jnp.float32),   # running sum l
                pltpu.VMEM((tq, C), jnp.float32),   # f32 accumulator
            ],
        ),
        compiler_params=pltpu.CompilerParams(
            dimension_semantics=("parallel", "parallel"),
            vmem_limit_bytes=48 * 1024 * 1024),
    )(xres, q, k, v, wo, bo)

    # Single layout restore in XLA: token-major (B, S, C) -> NCHW.
    return jnp.transpose(y_tok, (0, 2, 1)).reshape(B, C, H, W)


# ---------------------------------------------------------------------------
# Params + pure-JAX reference
# ---------------------------------------------------------------------------
def init_params(key, channels):
    """Synthetic params matching nn.Linear(C, 3C) (in_proj) and nn.Linear(C, C) (out_proj)."""
    C = channels
    k1, k2, k3, k4 = jax.random.split(key, 4)
    w_in = jax.random.normal(k1, (3 * C, C), jnp.float32) * 0.05   # PyTorch (out, in)
    b_in = jax.random.normal(k2, (3 * C,), jnp.float32) * 0.05
    w_out = jax.random.normal(k3, (C, C), jnp.float32) * 0.05
    b_out = jax.random.normal(k4, (C,), jnp.float32) * 0.05
    return {
        # x @ w_qkv == x @ W_in.T ; columns [0:C | C:2C | 2C:3C] = q | k | v (chunk order)
        "w_qkv": w_in.T,            # (C, 3C)
        "b_qkv": b_in[None, :],     # (1, 3C)
        "wo": w_out.T,              # (C, C)
        "bo": b_out[None, :],       # (1, C)
        # group_norm params exist in __init__ but the reference forward() never applies them.
    }


def reference_forward(x_nchw, params):
    """Pure-JAX (f32) reference of the exact PyTorch forward semantics."""
    B, C, H, W = x_nchw.shape
    S = H * W
    x = jnp.transpose(x_nchw.reshape(B, C, S), (0, 2, 1))          # (B, S, C)
    qkv = x @ params["w_qkv"] + params["b_qkv"]
    q, k, v = qkv[..., :C], qkv[..., C:2 * C], qkv[..., 2 * C:]
    scores = (q @ jnp.swapaxes(k, -1, -2)) / math.sqrt(C)
    p = jax.nn.softmax(scores, axis=-1)
    out = p @ v @ params["wo"] + params["bo"] + x
    return jnp.transpose(out, (0, 2, 1)).reshape(B, C, H, W)


if __name__ == "__main__":
    # Small shape (GroupNorm(32, C) implies C % 32 == 0); S=256 with max_tile=128
    # exercises the multi-tile path (grid (2, 2) + 2 in-kernel kv chunks).
    B, C, H, W = 2, 32, 16, 16
    key = jax.random.PRNGKey(0)
    kx, kp = jax.random.split(key)
    x = jax.random.normal(kx, (B, C, H, W), jnp.float32)
    params = init_params(kp, C)

    y = jax.block_until_ready(vae_attention_block(x, params, max_tile=128))
    y_ref = jax.block_until_ready(reference_forward(x, params))

    # bf16 MXU inputs / bf16 residual with f32 accumulation -> loosened tolerance.
    np.testing.assert_allclose(np.asarray(y), np.asarray(y_ref), rtol=2e-2, atol=2e-2)
    print("KERNEL_OK")
</pallas_src>

<mosaic_0001>
module attributes {stable_mosaic.version = 11 : i64} {
  func.func @_qkv_proj_kernel(%arg0: i32, %arg1: i32, %arg2: memref<1x32x128xf32, #tpu.memory_space<vmem>>, %arg3: memref<32x96xbf16, #tpu.memory_space<vmem>>, %arg4: memref<1x96xf32, #tpu.memory_space<vmem>>, %arg5: memref<1x128x32xbf16, #tpu.memory_space<vmem>>, %arg6: memref<1x128x32xbf16, #tpu.memory_space<vmem>>, %arg7: memref<1x128x32xbf16, #tpu.memory_space<vmem>>, %arg8: memref<1x128x32xbf16, #tpu.memory_space<vmem>>) attributes {dimension_semantics = [#tpu.dimension_semantics<parallel>, #tpu.dimension_semantics<parallel>], iteration_bounds = array<i64: 2, 2>, scalar_prefetch = 0 : i64, scratch_operands = 0 : i64, tpu.core_type = #tpu.core_type<tc>, window_params = [{transform_indices = @transform_0, window_bounds = array<i64: 1, 32, 128>}, {pipeline_mode = #tpu.pipeline_mode<synchronous>, transform_indices = @transform_1, window_bounds = array<i64: 32, 96>}, {pipeline_mode = #tpu.pipeline_mode<synchronous>, transform_indices = @transform_2, window_bounds = array<i64: 1, 96>}, {transform_indices = @transform_3, window_bounds = array<i64: 1, 128, 32>}, {transform_indices = @transform_4, window_bounds = array<i64: 1, 128, 32>}, {transform_indices = @transform_5, window_bounds = array<i64: 1, 128, 32>}, {transform_indices = @transform_6, window_bounds = array<i64: 1, 128, 32>}]} {
    %c0 = arith.constant 0 : index
    %c0_0 = arith.constant 0 : index
    %c0_1 = arith.constant 0 : index
    %0 = vector.load %arg2[%c0, %c0_0, %c0_1] : memref<1x32x128xf32, #tpu.memory_space<vmem>>, vector<1x32x128xf32>
    %1 = vector.shape_cast %0 : vector<1x32x128xf32> to vector<32x128xf32>
    %2 = arith.truncf %1 : vector<32x128xf32> to vector<32x128xbf16>
    %3 = tpu.transpose %2, [1, 0] : vector<32x128xbf16> -> vector<128x32xbf16>
    %c0_2 = arith.constant 0 : index
    %c0_3 = arith.constant 0 : index
    %4 = vector.load %arg3[%c0_2, %c0_3] : memref<32x96xbf16, #tpu.memory_space<vmem>>, vector<32x96xbf16>
    %cst = arith.constant dense<0.000000e+00> : vector<128x96xf32>
    %5 = tpu.matmul %3, %4, %cst {dimension_numbers = #tpu.dot_dimension_numbers<[1], [0], [0], [1], [0, 0, 1, 1], [], []>} : vector<128x32xbf16>, vector<32x96xbf16>, vector<128x96xf32> -> vector<128x96xf32>
    %c0_4 = arith.constant 0 : index
    %c0_5 = arith.constant 0 : index
    %6 = vector.load %arg4[%c0_4, %c0_5] : memref<1x96xf32, #tpu.memory_space<vmem>>, vector<1x96xf32>
    %7 = vector.broadcast %6 : vector<1x96xf32> to vector<128x96xf32>
    %8 = arith.addf %5, %7 : vector<128x96xf32>
    %9 = vector.extract_strided_slice %8 {offsets = [0, 0], sizes = [128, 32], strides = [1, 1]} : vector<128x96xf32> to vector<128x32xf32>
    %cst_6 = arith.constant 0.176776692 : f32
    %10 = vector.broadcast %cst_6 : f32 to vector<128x32xf32>
    %11 = arith.mulf %9, %10 : vector<128x32xf32>
    %12 = arith.truncf %11 : vector<128x32xf32> to vector<128x32xbf16>
    %c0_7 = arith.constant 0 : index
    %c0_8 = arith.constant 0 : index
    %c0_9 = arith.constant 0 : index
    %13 = vector.load %arg5[%c0_7, %c0_8, %c0_9] : memref<1x128x32xbf16, #tpu.memory_space<vmem>>, vector<1x128x32xbf16>
    %14 = vector.shape_cast %13 : vector<1x128x32xbf16> to vector<128x32xbf16>
    %15 = vector.shape_cast %12 : vector<128x32xbf16> to vector<1x128x32xbf16>
    tpu.vector_store %arg5[%c0_7, %c0_8, %c0_9], %15 {strides = array<i32>} : memref<1x128x32xbf16, #tpu.memory_space<vmem>>, vector<1x128x32xbf16>,
    %16 = vector.extract_strided_slice %8 {offsets = [0, 32], sizes = [128, 32], strides = [1, 1]} : vector<128x96xf32> to vector<128x32xf32>
    %17 = arith.truncf %16 : vector<128x32xf32> to vector<128x32xbf16>
    %c0_10 = arith.constant 0 : index
    %c0_11 = arith.constant 0 : index
    %c0_12 = arith.constant 0 : index
    %18 = vector.load %arg6[%c0_10, %c0_11, %c0_12] : memref<1x128x32xbf16, #tpu.memory_space<vmem>>, vector<1x128x32xbf16>
    %19 = vector.shape_cast %18 : vector<1x128x32xbf16> to vector<128x32xbf16>
    %20 = vector.shape_cast %17 : vector<128x32xbf16> to vector<1x128x32xbf16>
    tpu.vector_store %arg6[%c0_10, %c0_11, %c0_12], %20 {strides = array<i32>} : memref<1x128x32xbf16, #tpu.memory_space<vmem>>, vector<1x128x32xbf16>,
    %21 = vector.extract_strided_slice %8 {offsets = [0, 64], sizes = [128, 32], strides = [1, 1]} : vector<128x96xf32> to vector<128x32xf32>
    %22 = arith.truncf %21 : vector<128x32xf32> to vector<128x32xbf16>
    %c0_13 = arith.constant 0 : index
    %c0_14 = arith.constant 0 : index
    %c0_15 = arith.constant 0 : index
    %23 = vector.load %arg7[%c0_13, %c0_14, %c0_15] : memref<1x128x32xbf16, #tpu.memory_space<vmem>>, vector<1x128x32xbf16>
    %24 = vector.shape_cast %23 : vector<1x128x32xbf16> to vector<128x32xbf16>
    %25 = vector.shape_cast %22 : vector<128x32xbf16> to vector<1x128x32xbf16>
    tpu.vector_store %arg7[%c0_13, %c0_14, %c0_15], %25 {strides = array<i32>} : memref<1x128x32xbf16, #tpu.memory_space<vmem>>, vector<1x128x32xbf16>,
    %c0_16 = arith.constant 0 : index
    %c0_17 = arith.constant 0 : index
    %c0_18 = arith.constant 0 : index
    %26 = vector.load %arg8[%c0_16, %c0_17, %c0_18] : memref<1x128x32xbf16, #tpu.memory_space<vmem>>, vector<1x128x32xbf16>
    %27 = vector.shape_cast %26 : vector<1x128x32xbf16> to vector<128x32xbf16>
    %28 = vector.shape_cast %3 : vector<128x32xbf16> to vector<1x128x32xbf16>
    tpu.vector_store %arg8[%c0_16, %c0_17, %c0_18], %28 {strides = array<i32>} : memref<1x128x32xbf16, #tpu.memory_space<vmem>>, vector<1x128x32xbf16>,
    return
  }
  func.func @transform_0(%arg0: i32, %arg1: i32) -> (i32, i32, i32) {
    %c0_i32 = arith.constant 0 : i32
    %c0_i32_0 = arith.constant 0 : i32
    return %arg0, %c0_i32, %arg1 : i32, i32, i32
  }
  func.func @transform_1(%arg0: i32, %arg1: i32) -> (i32, i32) {
    %c0_i32 = arith.constant 0 : i32
    %c0_i32_0 = arith.constant 0 : i32
    %c0_i32_1 = arith.constant 0 : i32
    return %c0_i32, %c0_i32_0 : i32, i32
  }
  func.func @transform_2(%arg0: i32, %arg1: i32) -> (i32, i32) {
    %c0_i32 = arith.constant 0 : i32
    %c0_i32_0 = arith.constant 0 : i32
    %c0_i32_1 = arith.constant 0 : i32
    return %c0_i32, %c0_i32_0 : i32, i32
  }
  func.func @transform_3(%arg0: i32, %arg1: i32) -> (i32, i32, i32) {
    %c0_i32 = arith.constant 0 : i32
    %c0_i32_0 = arith.constant 0 : i32
    return %arg0, %arg1, %c0_i32 : i32, i32, i32
  }
  func.func @transform_4(%arg0: i32, %arg1: i32) -> (i32, i32, i32) {
    %c0_i32 = arith.constant 0 : i32
    %c0_i32_0 = arith.constant 0 : i32
    return %arg0, %arg1, %c0_i32 : i32, i32, i32
  }
  func.func @transform_5(%arg0: i32, %arg1: i32) -> (i32, i32, i32) {
    %c0_i32 = arith.constant 0 : i32
    %c0_i32_0 = arith.constant 0 : i32
    return %arg0, %arg1, %c0_i32 : i32, i32, i32
  }
  func.func @transform_6(%arg0: i32, %arg1: i32) -> (i32, i32, i32) {
    %c0_i32 = arith.constant 0 : i32
    %c0_i32_0 = arith.constant 0 : i32
    return %arg0, %arg1, %c0_i32 : i32, i32, i32
  }
}

</mosaic_0001>

<llo_original>
// kernel: tpu_custom_call.1
$region0: #{tpu_custom_call.1}
  #allocation0 [shape = 'u32[]', space=smem, size = 0x4, offset = 0x4, fixed_abs, tag = 'smem constant byte address 0x4 - core index']
  #allocation1 [shape = 'u32[144,128]{1,0:T(1,128)}', space=vmem, size = 0x12000, scoped, tag = 'internal scratch']
  %s0 = inlined_call_operand.hbm [shape: f32[2,32,256], index: 0, kind: input, shape index: {}]
  %s1 = inlined_call_operand.hbm [shape: bf16[32,96], index: 1, kind: input, shape index: {}]
  %s2 = inlined_call_operand.vmem [shape: f32[1,96], index: 2, kind: input, shape index: {}]
  %s3 = inlined_call_operand.vmem [shape: bf16[2,256,32], index: 3, kind: output, shape index: {0}]
  %s4 = inlined_call_operand.vmem [shape: bf16[2,256,32], index: 4, kind: output, shape index: {1}]
  %s5 = inlined_call_operand.vmem [shape: bf16[2,256,32], index: 5, kind: output, shape index: {2}]
  %s6 = inlined_call_operand.vmem [shape: bf16[2,256,32], index: 6, kind: output, shape index: {3}]
  %7 = xla_tuple %s3, %s4, %s5, %s6
  %s8 = sld [smem:[#allocation0]]
  $region77: #{tpu_custom_call.1} parent=0
    _
  %s10 = ssub.s32 1, %s8
  %s11 = scalar_select 0, %s10, %s8
  $region1: #{tpu_custom_call.1} parent=0
    #allocation2 [shape = 'u8[32768]{0}', space=vmem, size = 0x8000, scoped, tag = 'input window, operand 0']
    #allocation3 [shape = 's32[2]{0}', space=sflag, size = 0x8, scoped, tag = 'scoped memory for tpu_custom_call.1']
    #allocation4 [shape = 'u8[8192]{0}', space=vmem, size = 0x2000, scoped, tag = 'input window, operand 1, single buffered']
    #allocation5 [shape = 's32[1]{0}', space=sflag, size = 0x4, scoped, tag = 'scoped memory for tpu_custom_call.1']
    %12 = vsyncpa [#allocation3], 0
    %s13 = scalar_lea.sflag [#allocation3], 1
    %14 = vsyncpa %s13, 0
    %15 = vsyncpa [#allocation5], 0
    loop: start=0, step=1, limit=6
    $region2: #{tpu_custom_call.1} parent=1 // loop_pre_header
      _
    $region3: #{tpu_custom_call.1} parent=1 // loop_header
      %s17 = sphi 0, %s21
      %p18 = scmp.ge.s32.totalorder %s17, 6
      %s24 = sphi 0, %s36
      %s25 = sphi 0, %s32
      %s26 = sphi 0, %s24
      %s27 = sphi 0, %s25
      %s28 = sphi 0, %s26
      %s29 = sphi 0, %s27
      %s41 = sphi 0, %s43
      %s44 = sphi 0, %s41
      %s45 = sphi 0, %s44
      %s61 = sphi 0, %s45
      %s65 = sphi 0, %s65
      %s67 = sphi 0, %s65
      %s68 = sphi 0, %s67
      %s82 = sphi 0, %s68
      %s86 = sphi 0, %s86
      %s88 = sphi 0, %s86
      %s89 = sphi 0, %s88
      %s103 = sphi 0, %s89
      %s111 = sphi 0, %s113
      %s114 = sphi 0, %s111
      %s115 = sphi 0, %s114
      %s131 = sphi 0, %s115
      %s139 = sphi 0, %s141
      %s142 = sphi 0, %s139
      %s143 = sphi 0, %s142
      %s159 = sphi 0, %s143
      %s167 = sphi 0, %s169
      %s170 = sphi 0, %s167
      %s171 = sphi 0, %s170
      %s187 = sphi 0, %s171
      %s195 = sphi 0, %s197
      %s198 = sphi 0, %s195
      %s199 = sphi 0, %s198
      %s215 = sphi 0, %s199
    $region4: #{tpu_custom_call.1} parent=1 // loop_header_branch
      %20 = sbr.rel (%p18) target = $region8
    $region5: #{tpu_custom_call.1} parent=1 // loop_body
      %s22 = ssub.s32 %s17, 1
      %s23 = ssub.s32 %s17, 2
      %s30 = sadd.s32 1, %s25
      %p31 = scmp.ge.s32.totalorder %s30, 2
      %s32 = scalar_select %p31, 0, %s30
      %s33 = sadd.s32 1, %s24
      %s34 = scalar_select %p31, %s33, %s24
      %p35 = scmp.ge.s32.totalorder %s34, 2
      %s36 = scalar_select %p35, 0, %s34
      %s37 = ssub.s32 %s24, %s36
      %s38 = ssub.s32 %s25, %s32
      %s39 = sor.u32 %s37, %s38
      %p40 = scmp.eq.s32.totalorder %s39, 0
      %s42 = sadd.s32 %s41, 1
      %s43 = scalar_select %p40, %s41, %s42
      %p46 = pneg %p40
      %p47 = scmp.eq.s32.totalorder %s17, 3
      %p48 = por %p46, %p47
      %p49 = scmp.ne.s32.totalorder %s41, %s44
      %p50 = scmp.eq.s32.totalorder %s17, 0
      %p51 = por %p49, %p50
      %p52 = scmp.ne.s32.totalorder %s41, %s44
      %p53 = scmp.eq.s32.totalorder %s22, 3
      %p54 = por %p52, %p53
      %p55 = scmp.ne.s32.totalorder %s44, %s45
      %p56 = scmp.eq.s32.totalorder %s22, 0
      %p57 = por %p55, %p56
      %p58 = scmp.ne.s32.totalorder %s44, %s45
      %p59 = scmp.eq.s32.totalorder %s23, 3
      %p60 = por %p58, %p59
      %p62 = scmp.ne.s32.totalorder %s45, %s61
      %p63 = scmp.eq.s32.totalorder %s23, 0
      %p64 = por %p62, %p63
      %s66 = sadd.s32 %s65, 1
      %p69 = scmp.eq.s32.totalorder %s17, 3
      %p70 = scmp.ne.s32.totalorder %s65, %s67
      %p71 = scmp.eq.s32.totalorder %s17, 0
      %p72 = por %p70, %p71
      %p73 = scmp.ne.s32.totalorder %s65, %s67
      %p74 = scmp.eq.s32.totalorder %s22, 3
      %p75 = por %p73, %p74
      %p76 = scmp.ne.s32.totalorder %s67, %s68
      %p77 = scmp.eq.s32.totalorder %s22, 0
      %p78 = por %p76, %p77
      %p79 = scmp.ne.s32.totalorder %s67, %s68
      %p80 = scmp.eq.s32.totalorder %s23, 3
      %p81 = por %p79, %p80
      %p83 = scmp.ne.s32.totalorder %s68, %s82
      %p84 = scmp.eq.s32.totalorder %s23, 0
      %p85 = por %p83, %p84
      %s87 = sadd.s32 %s86, 1
      %p90 = scmp.eq.s32.totalorder %s17, 3
      %p91 = scmp.ne.s32.totalorder %s86, %s88
      %p92 = scmp.eq.s32.totalorder %s17, 0
      %p93 = por %p91, %p92
      %p94 = scmp.ne.s32.totalorder %s86, %s88
      %p95 = scmp.eq.s32.totalorder %s22, 3
      %p96 = por %p94, %p95
      %p97 = scmp.ne.s32.totalorder %s88, %s89
      %p98 = scmp.eq.s32.totalorder %s22, 0
      %p99 = por %p97, %p98
      %p100 = scmp.ne.s32.totalorder %s88, %s89
      %p101 = scmp.eq.s32.totalorder %s23, 3
      %p102 = por %p100, %p101
      %p104 = scmp.ne.s32.totalorder %s89, %s103
      %p105 = scmp.eq.s32.totalorder %s23, 0
      %p106 = por %p104, %p105
      %s107 = ssub.s32 %s24, %s36
      %s108 = ssub.s32 %s25, %s32
      %s109 = sor.u32 %s107, %s108
      %p110 = scmp.eq.s32.totalorder %s109, 0
      %s112 = sadd.s32 %s111, 1
      %s113 = scalar_select %p110, %s111, %s112
      %p116 = pneg %p110
      %p117 = scmp.eq.s32.totalorder %s17, 3
      %p118 = por %p116, %p117
      %p119 = scmp.ne.s32.totalorder %s111, %s114
      %p120 = scmp.eq.s32.totalorder %s17, 0
      %p121 = por %p119, %p120
      %p122 = scmp.ne.s32.totalorder %s111, %s114
      %p123 = scmp.eq.s32.totalorder %s22, 3
      %p124 = por %p122, %p123
      %p125 = scmp.ne.s32.totalorder %s114, %s115
      %p126 = scmp.eq.s32.totalorder %s22, 0
      %p127 = por %p125, %p126
      %p128 = scmp.ne.s32.totalorder %s114, %s115
      %p129 = scmp.eq.s32.totalorder %s23, 3
      %p130 = por %p128, %p129
      %p132 = scmp.ne.s32.totalorder %s115, %s131
      %p133 = scmp.eq.s32.totalorder %s23, 0
      %p134 = por %p132, %p133
      %s135 = ssub.s32 %s24, %s36
      %s136 = ssub.s32 %s25, %s32
      %s137 = sor.u32 %s135, %s136
      %p138 = scmp.eq.s32.totalorder %s137, 0
      %s140 = sadd.s32 %s139, 1
      %s141 = scalar_select %p138, %s139, %s140
      %p144 = pneg %p138
      %p145 = scmp.eq.s32.totalorder %s17, 3
      %p146 = por %p144, %p145
      %p147 = scmp.ne.s32.totalorder %s139, %s142
      %p148 = scmp.eq.s32.totalorder %s17, 0
      %p149 = por %p147, %p148
      %p150 = scmp.ne.s32.totalorder %s139, %s142
      %p151 = scmp.eq.s32.totalorder %s22, 3
      %p152 = por %p150, %p151
      %p153 = scmp.ne.s32.totalorder %s142, %s143
      %p154 = scmp.eq.s32.totalorder %s22, 0
      %p155 = por %p153, %p154
      %p156 = scmp.ne.s32.totalorder %s142, %s143
      %p157 = scmp.eq.s32.totalorder %s23, 3
      %p158 = por %p156, %p157
      %p160 = scmp.ne.s32.totalorder %s143, %s159
      %p161 = scmp.eq.s32.totalorder %s23, 0
      %p162 = por %p160, %p161
      %s163 = ssub.s32 %s24, %s36
      %s164 = ssub.s32 %s25, %s32
      %s165 = sor.u32 %s163, %s164
      %p166 = scmp.eq.s32.totalorder %s165, 0
      %s168 = sadd.s32 %s167, 1
      %s169 = scalar_select %p166, %s167, %s168
      %p172 = pneg %p166
      %p173 = scmp.eq.s32.totalorder %s17, 3
      %p174 = por %p172, %p173
      %p175 = scmp.ne.s32.totalorder %s167, %s170
      %p176 = scmp.eq.s32.totalorder %s17, 0
      %p177 = por %p175, %p176
      %p178 = scmp.ne.s32.totalorder %s167, %s170
      %p179 = scmp.eq.s32.totalorder %s22, 3
      %p180 = por %p178, %p179
      %p181 = scmp.ne.s32.totalorder %s170, %s171
      %p182 = scmp.eq.s32.totalorder %s22, 0
      %p183 = por %p181, %p182
      %p184 = scmp.ne.s32.totalorder %s170, %s171
      %p185 = scmp.eq.s32.totalorder %s23, 3
      %p186 = por %p184, %p185
      %p188 = scmp.ne.s32.totalorder %s171, %s187
      %p189 = scmp.eq.s32.totalorder %s23, 0
      %p190 = por %p188, %p189
      %s191 = ssub.s32 %s24, %s36
      %s192 = ssub.s32 %s25, %s32
      %s193 = sor.u32 %s191, %s192
      %p194 = scmp.eq.s32.totalorder %s193, 0
      %s196 = sadd.s32 %s195, 1
      %s197 = scalar_select %p194, %s195, %s196
      %p200 = pneg %p194
      %p201 = scmp.eq.s32.totalorder %s17, 3
      %p202 = por %p200, %p201
      %p203 = scmp.ne.s32.totalorder %s195, %s198
      %p204 = scmp.eq.s32.totalorder %s17, 0
      %p205 = por %p203, %p204
      %p206 = scmp.ne.s32.totalorder %s195, %s198
      %p207 = scmp.eq.s32.totalorder %s22, 3
      %p208 = por %p206, %p207
      %p209 = scmp.ne.s32.totalorder %s198, %s199
      %p210 = scmp.eq.s32.totalorder %s22, 0
      %p211 = por %p209, %p210
      %p212 = scmp.ne.s32.totalorder %s198, %s199
      %p213 = scmp.eq.s32.totalorder %s23, 3
      %p214 = por %p212, %p213
      %p216 = scmp.ne.s32.totalorder %s199, %s215
      %p217 = scmp.eq.s32.totalorder %s23, 0
      %p218 = por %p216, %p217
      %p219 = scmp.le.s32.totalorder 1, %s17
      %p220 = scmp.lt.s32.totalorder %s17, 5
      %p221 = pnand %p219, %p220
      %p222 = pneg %p221
      // Predicated region
      $region9: #{tpu_custom_call.1} parent=5 // pred_check
        _
      $region10: #{tpu_custom_call.1} parent=5 // pred_check_branch
        %224 = sbr.rel (%p221) target = $region12
      $region11: #{tpu_custom_call.1} parent=5 // pred_region
        %s225 = ssub.s32 %s17, 1
        // Predicated region
        $region13: #{tpu_custom_call.1} parent=11 // pred_check
          %p226 = pneg %p78
        $region14: #{tpu_custom_call.1} parent=11 // pred_check_branch
          %228 = sbr.rel (%p226) target = $region16
        $region15: #{tpu_custom_call.1} parent=11 // pred_region
          %s230 = ssub.s32 256, 256
          %231 = vsyncadd [#allocation5], %s230
          %s232 = sshll.u32 [#allocation4], 4
          %s233 = int_to_ptr.vmem [resolvable:$true] %s232
          %238 = dma.hbm_to_vmem [thread:$0]  %s1, 256, %s233, [#allocation5], 64, 64, 4
        $region16: #{tpu_custom_call.1} parent=11 // pred_fallthru
          _
        // Predicated region
        $region17: #{tpu_custom_call.1} parent=11 // pred_check
          %p239 = pneg %p99
        $region18: #{tpu_custom_call.1} parent=11 // pred_check_branch
          %241 = sbr.rel (%p239) target = $region20
        $region19: #{tpu_custom_call.1} parent=11 // pred_region
          _
        $region20: #{tpu_custom_call.1} parent=11 // pred_fallthru
          _
      $region12: #{tpu_custom_call.1} parent=5 // pred_fallthru
        _
      %p242 = scmp.lt.s32.totalorder %s17, 4
      // Predicated region
      $region21: #{tpu_custom_call.1} parent=5 // pred_check
        %p243 = pneg %p242
      $region22: #{tpu_custom_call.1} parent=5 // pred_check_branch
        %245 = sbr.rel (%p243) target = $region24
      $region23: #{tpu_custom_call.1} parent=5 // pred_region
        // Predicated region
        $region25: #{tpu_custom_call.1} parent=23 // pred_check
          %p246 = pneg %p51
        $region26: #{tpu_custom_call.1} parent=23 // pred_check_branch
          %248 = sbr.rel (%p246) target = $region28
        $region27: #{tpu_custom_call.1} parent=23 // pred_region
          %s249 = sand.u32 %s41, 1
          %s250 = scalar_lea.sflag [#allocation3], %s249
          %s251 = sand.u32 %s41, 1
          %s252 = smul.addr %s251, 32
          %s253 = scalar_lea.vmem [#allocation2], %s252
          %s255 = ssub.s32 512, 512
          %256 = vsyncadd %s250, %s255
          %s257 = smul.addr %s24, 8
          %s258 = sadd.s32 %s25, %s257
          %s259 = smul.addr %s258, 128
          %s260 = scalar_lea.hbm %s0, %s259
          %s261 = sshll.u32 %s253, 4
          %s262 = int_to_ptr.vmem [resolvable:$true] %s261
          %267 = dma.hbm_to_vmem [thread:$0]  %s260, 512, %s262, %s250, 256, 128, 8
        $region28: #{tpu_custom_call.1} parent=23 // pred_fallthru
          _
      $region24: #{tpu_custom_call.1} parent=5 // pred_fallthru
        _
      %p268 = scmp.le.s32.totalorder 1, %s17
      %p269 = scmp.lt.s32.totalorder %s17, 5
      %p270 = pnand %p268, %p269
      %p271 = pneg %p270
      // Predicated region
      $region29: #{tpu_custom_call.1} parent=5 // pred_check
        _
      $region30: #{tpu_custom_call.1} parent=5 // pred_check_branch
        %273 = sbr.rel (%p270) target = $region32
      $region31: #{tpu_custom_call.1} parent=5 // pred_region
        %s274 = ssub.s32 %s17, 1
        %s275 = sand.u32 %s44, 1
        %s276 = scalar_lea.sflag [#allocation3], %s275
        %s277 = sand.u32 %s44, 1
        %s278 = smul.addr %s277, 32
        %s279 = scalar_lea.vmem [#allocation2], %s278
        // Predicated region
        $region33: #{tpu_custom_call.1} parent=31 // pred_check
          %p280 = pneg %p57
        $region34: #{tpu_custom_call.1} parent=31 // pred_check_branch
          %282 = sbr.rel (%p280) target = $region36
        $region35: #{tpu_custom_call.1} parent=31 // pred_region
          %283 = dma.done %s276, 512
        $region36: #{tpu_custom_call.1} parent=31 // pred_fallthru
          _
        // Predicated region
        $region37: #{tpu_custom_call.1} parent=31 // pred_check
          %p284 = pneg %p78
        $region38: #{tpu_custom_call.1} parent=31 // pred_check_branch
          %286 = sbr.rel (%p284) target = $region40
        $region39: #{tpu_custom_call.1} parent=31 // pred_region
          %287 = dma.done [#allocation5], 256
        $region40: #{tpu_custom_call.1} parent=31 // pred_fallthru
          _
        %s288 = sand.u32 %s44, 1
        %s289 = scalar_lea.sflag [#allocation3], %s288
        %s290 = sand.u32 %s44, 1
        %s291 = smul.addr %s290, 32
        %s292 = scalar_lea.vmem [#allocation2], %s291
        %p293 = pneg %p57
        %p294 = pneg %p54
        %p295 = pneg %p78
        %p296 = pneg %p75
        %p297 = pneg %p99
        %p298 = pneg %p96
        %p299 = pneg %p127
        %p300 = pneg %p124
        %s301 = smul.u32 16, %s27
        %p302 = scmp.lt.s32.totalorder %s26, 1
        %s303 = scalar_select %p302, %s26, 1
        %p304 = scmp.lt.s32.totalorder %s301, 31
        %s305 = scalar_select %p304, %s301, 31
        %s306 = smul.addr %s303, 32
        %s307 = sadd.s32 %s305, %s306
        %s308 = smul.addr %s307, 4
        %s309 = scalar_lea.vmem %s3, %s308
        %p310 = pneg %p155
        %p311 = pneg %p152
        %s312 = smul.u32 16, %s27
        %p313 = scmp.lt.s32.totalorder %s26, 1
        %s314 = scalar_select %p313, %s26, 1
        %p315 = scmp.lt.s32.totalorder %s312, 31
        %s316 = scalar_select %p315, %s312, 31
        %s317 = smul.addr %s314, 32
        %s318 = sadd.s32 %s316, %s317
        %s319 = smul.addr %s318, 4
        %s320 = scalar_lea.vmem %s4, %s319
        %p321 = pneg %p183
        %p322 = pneg %p180
        %s323 = smul.u32 16, %s27
        %p324 = scmp.lt.s32.totalorder %s26, 1
        %s325 = scalar_select %p324, %s26, 1
        %p326 = scmp.lt.s32.totalorder %s323, 31
        %s327 = scalar_select %p326, %s323, 31
        %s328 = smul.addr %s325, 32
        %s329 = sadd.s32 %s327, %s328
        %s330 = smul.addr %s329, 4
        %s331 = scalar_lea.vmem %s5, %s330
        %p332 = pneg %p211
        %p333 = pneg %p208
        %s334 = smul.u32 16, %s27
        %p335 = scmp.lt.s32.totalorder %s26, 1
        %s336 = scalar_select %p335, %s26, 1
        %p337 = scmp.lt.s32.totalorder %s334, 31
        %s338 = scalar_select %p337, %s334, 31
        %s339 = smul.addr %s336, 32
        %s340 = sadd.s32 %s338, %s339
        %s341 = smul.addr %s340, 4
        %s342 = scalar_lea.vmem %s6, %s341
        %s343 = smul.u32 16, %s27
        %p344 = scmp.lt.s32.totalorder %s26, 1
        %s345 = scalar_select %p344, %s26, 1
        %p346 = scmp.lt.s32.totalorder %s343, 31
        %s347 = scalar_select %p346, %s343, 31
        %s348 = smul.addr %s345, 32
        %s349 = sadd.s32 %s347, %s348
        %s350 = smul.addr %s349, 4
        %s351 = scalar_lea.vmem %s3, %s350
        %s352 = smul.u32 16, %s27
        %s353 = smul.u32 16, %s27
        %p354 = scmp.lt.s32.totalorder %s26, 1
        %s355 = scalar_select %p354, %s26, 1
        %p356 = scmp.lt.s32.totalorder %s353, 31
        %s357 = scalar_select %p356, %s353, 31
        %s358 = smul.addr %s355, 32
        %s359 = sadd.s32 %s357, %s358
        %s360 = smul.addr %s359, 4
        %s361 = scalar_lea.vmem %s4, %s360
        %s362 = smul.u32 16, %s27
        %s363 = smul.u32 16, %s27
        %p364 = scmp.lt.s32.totalorder %s26, 1
        %s365 = scalar_select %p364, %s26, 1
        %p366 = scmp.lt.s32.totalorder %s363, 31
        %s367 = scalar_select %p366, %s363, 31
        %s368 = smul.addr %s365, 32
        %s369 = sadd.s32 %s367, %s368
        %s370 = smul.addr %s369, 4
        %s371 = scalar_lea.vmem %s5, %s370
        %s372 = smul.u32 16, %s27
        %s373 = smul.u32 16, %s27
        %p374 = scmp.lt.s32.totalorder %s26, 1
        %s375 = scalar_select %p374, %s26, 1
        %p376 = scmp.lt.s32.totalorder %s373, 31
        %s377 = scalar_select %p376, %s373, 31
        %s378 = smul.addr %s375, 32
        %s379 = sadd.s32 %s377, %s378
        %s380 = smul.addr %s379, 4
        %s381 = scalar_lea.vmem %s6, %s380
        %s382 = smul.u32 16, %s27
        %v384 = vld [vmem:[%s279] sm:$0xff]
        %v385 = vld [vmem:[%s279 + $0x8] sm:$0xff]
        %v386 = vld [vmem:[%s279 + $0x10] sm:$0xff]
        %v387 = vld [vmem:[%s279 + $0x18] sm:$0xff]
        %v388 = vpack.c.bf16 %v385, %v384
        %v389 = vpack.c.bf16 %v387, %v386
        %390 = vxpose.xlu0.c.b16.start [1/8] %v388, 128
        %391 = vxpose.xlu0.c.b16.cont [2/8] %v389, 128
        %392 = vxpose.xlu0.c.b16.cont [3/8] 0, 128
        %393 = vxpose.xlu0.c.b16.cont [4/8] 0, 128
        %394 = vxpose.xlu0.c.b16.cont [5/8] 0, 128
        %395 = vxpose.xlu0.c.b16.cont [6/8] 0, 128
        %396 = vxpose.xlu0.c.b16.cont [7/8] 0, 128
        %397 = vxpose.xlu0.c.b16.end [8/8] 0, 128
        %v398 = vpop.trf.xlu0
        %v399 = vpop.trf.xlu0
        %v400 = vpop.trf.xlu0
        %v401 = vpop.trf.xlu0
        %v402 = vpop.trf.xlu0
        %v403 = vpop.trf.xlu0
        %v404 = vpop.trf.xlu0
        %v405 = vpop.trf.xlu0
        %v406 = vld [vmem:[#allocation4] sm:$0xf]
        %v407 = vld [vmem:[#allocation4 + $0x4] sm:$0xf]
        %v408 = vld [vmem:[#allocation4 + $0x8] sm:$0xf]
        %v409 = vld [vmem:[#allocation4 + $0xc] sm:$0xf]
        %v410 = vld [vmem:[%s2] sm:$0x1]
        %v412 = vlaneseq
        %v413 = vshrl.u32 %v412, 7
        %v414 = vsub.s32 0, %v413
        %v415 = vrot.slane %v410, %v414
        %v421 = vunpack.c.l.b16 %v406
        %v422 = vunpack.c.l.b16 %v407
        %v423 = vunpack.c.l.b16 %v408
        %v424 = vunpack.c.l.b16 %v409
        %v425 = vpack.c.b16 %v422, %v421
        %v426 = vpack.c.b16 %v424, %v423
        %vm429 = vcmask 261120
        %v431 = vsel %vm429, %v398, 0
        %v434 = vsel %vm429, %v399, 0
        %v437 = vsel %vm429, %v400, 0
        %v440 = vsel %vm429, %v401, 0
        %v443 = vsel %vm429, %v402, 0
        %v446 = vsel %vm429, %v403, 0
        %v449 = vsel %vm429, %v404, 0
        %v452 = vsel %vm429, %v405, 0
        %454 = vmatprep.subr.bf16.mxu0 0
        %455 = vmatpush1.bf16.msra.mxu0 %v425
        %456 = vmatprep.subr.bf16.mxu0 0
        %457 = vmatpush1.bf16.msra.mxu0 %v426
        %458 = vmatprep.subr.bf16.mxu0 0
        %459 = vmatpush1.bf16.msra.mxu0 0
        %460 = vmatprep.subr.bf16.mxu0 0
        %461 = vmatpush1.bf16.msra.mxu0 0
        %462 = vmatprep.subr.bf16.mxu0 0
        %463 = vmatpush1.bf16.msra.mxu0 0
        %464 = vmatprep.subr.bf16.mxu0 0
        %465 = vmatpush1.bf16.msra.mxu0 0
        %466 = vmatprep.subr.bf16.mxu0 0
        %467 = vmatpush1.bf16.msra.mxu0 0
        %468 = vmatprep.subr.bf16.mxu0 0
        %469 = vmatpush1.bf16.msra.mxu0 0
        %470 = vmatprep.subr.bf16.mxu0 0
        %471 = vmatpush1.bf16.msra.mxu0 0
        %472 = vmatprep.subr.bf16.mxu0 0
        %473 = vmatpush1.bf16.msra.mxu0 0
        %474 = vmatprep.subr.bf16.mxu0 0
        %475 = vmatpush1.bf16.msra.mxu0 0
        %476 = vmatprep.subr.bf16.mxu0 0
        %477 = vmatpush1.bf16.msra.mxu0 0
        %478 = vmatprep.subr.bf16.mxu0 0
        %479 = vmatpush1.bf16.msra.mxu0 0
        %480 = vmatprep.subr.bf16.mxu0 0
        %481 = vmatpush1.bf16.msra.mxu0 0
        %482 = vmatprep.subr.bf16.mxu0 0
        %483 = vmatpush1.bf16.msra.mxu0 0
        %484 = vmatprep.subr.bf16.mxu0 0
        %485 = vmatpush1.bf16.msra.mxu0 0
        %486 = vmatprep.mubr.bf16.mxu0 0
        %487 = vmatmul.mubr.bf16.gmra.mrb[0].mxu0 %v431
        %v488 = vpop.f32.mrb[0].mxu0
        %v489 = vadd.f32 %v415, %v488
        %v490 = vpop.f32.mrb[0].mxu0
        %v491 = vpop.f32.mrb[0].mxu0
        %v492 = vadd.f32 %v415, %v491
        %v493 = vpop.f32.mrb[0].mxu0
        %494 = vmatprep.mubr.bf16.mxu0 0
        %495 = vmatmul.mubr.bf16.gmra.mrb[0].mxu0 %v434
        %v496 = vpop.f32.mrb[0].mxu0
        %v497 = vadd.f32 %v415, %v496
        %v498 = vpop.f32.mrb[0].mxu0
        %v499 = vpop.f32.mrb[0].mxu0
        %v500 = vadd.f32 %v415, %v499
        %v501 = vpop.f32.mrb[0].mxu0
        %502 = vmatprep.mubr.bf16.mxu0 0
        %503 = vmatmul.mubr.bf16.gmra.mrb[0].mxu0 %v437
        %v504 = vpop.f32.mrb[0].mxu0
        %v505 = vadd.f32 %v415, %v504
        %v506 = vpop.f32.mrb[0].mxu0
        %v507 = vpop.f32.mrb[0].mxu0
        %v508 = vadd.f32 %v415, %v507
        %v509 = vpop.f32.mrb[0].mxu0
        %510 = vmatprep.mubr.bf16.mxu0 0
        %511 = vmatmul.mubr.bf16.gmra.mrb[0].mxu0 %v440
        %v512 = vpop.f32.mrb[0].mxu0
        %v513 = vadd.f32 %v415, %v512
        %v514 = vpop.f32.mrb[0].mxu0
        %v515 = vpop.f32.mrb[0].mxu0
        %v516 = vadd.f32 %v415, %v515
        %v517 = vpop.f32.mrb[0].mxu0
        %518 = vmatprep.mubr.bf16.mxu0 0
        %519 = vmatmul.mubr.bf16.gmra.mrb[0].mxu0 %v443
        %v520 = vpop.f32.mrb[0].mxu0
        %v521 = vadd.f32 %v415, %v520
        %v522 = vpop.f32.mrb[0].mxu0
        %v523 = vpop.f32.mrb[0].mxu0
        %v524 = vadd.f32 %v415, %v523
        %v525 = vpop.f32.mrb[0].mxu0
        %526 = vmatprep.mubr.bf16.mxu0 0
        %527 = vmatmul.mubr.bf16.gmra.mrb[0].mxu0 %v446
        %v528 = vpop.f32.mrb[0].mxu0
        %v529 = vadd.f32 %v415, %v528
        %v530 = vpop.f32.mrb[0].mxu0
        %v531 = vpop.f32.mrb[0].mxu0
        %v532 = vadd.f32 %v415, %v531
        %v533 = vpop.f32.mrb[0].mxu0
        %534 = vmatprep.mubr.bf16.mxu0 0
        %535 = vmatmul.mubr.bf16.gmra.mrb[0].mxu0 %v449
        %v536 = vpop.f32.mrb[0].mxu0
        %v537 = vadd.f32 %v415, %v536
        %v538 = vpop.f32.mrb[0].mxu0
        %v539 = vpop.f32.mrb[0].mxu0
        %v540 = vadd.f32 %v415, %v539
        %v541 = vpop.f32.mrb[0].mxu0
        %542 = vmatprep.mubr.bf16.mxu0 0
        %543 = vmatmul.mubr.bf16.gmra.mrb[0].mxu0 %v452
        %v544 = vpop.f32.mrb[0].mxu0
        %v545 = vadd.f32 %v415, %v544
        %v546 = vpop.f32.mrb[0].mxu0
        %v547 = vpop.f32.mrb[0].mxu0
        %v548 = vadd.f32 %v415, %v547
        %v549 = vpop.f32.mrb[0].mxu0
        %550 = vdwg.mxu0
        %v551 = vmul.f32 %v489, 0.17677669
        %v552 = vmul.f32 %v492, 0.17677669
        %v553 = vmul.f32 %v497, 0.17677669
        %v554 = vmul.f32 %v500, 0.17677669
        %v555 = vmul.f32 %v505, 0.17677669
        %v556 = vmul.f32 %v508, 0.17677669
        %v557 = vmul.f32 %v513, 0.17677669
        %v558 = vmul.f32 %v516, 0.17677669
        %v559 = vmul.f32 %v521, 0.17677669
        %v560 = vmul.f32 %v524, 0.17677669
        %v561 = vmul.f32 %v529, 0.17677669
        %v562 = vmul.f32 %v532, 0.17677669
        %v563 = vmul.f32 %v537, 0.17677669
        %v564 = vmul.f32 %v540, 0.17677669
        %v565 = vmul.f32 %v545, 0.17677669
        %v566 = vmul.f32 %v548, 0.17677669
        %v567 = vpack.c.bf16 %v552, %v551
        %v568 = vpack.c.bf16 %v554, %v553
        %v569 = vpack.c.bf16 %v556, %v555
        %v570 = vpack.c.bf16 %v558, %v557
        %v571 = vpack.c.bf16 %v560, %v559
        %v572 = vpack.c.bf16 %v562, %v561
        %v573 = vpack.c.bf16 %v564, %v563
        %v574 = vpack.c.bf16 %v566, %v565
        %v583 = vunpack.c.l.b16 %v567
        %v584 = vunpack.c.h.b16 %v567
        %v585 = vunpack.c.l.b16 %v568
        %v586 = vunpack.c.h.b16 %v568
        %v587 = vunpack.c.l.b16 %v569
        %v588 = vunpack.c.h.b16 %v569
        %v589 = vunpack.c.l.b16 %v570
        %v590 = vunpack.c.h.b16 %v570
        %v591 = vunpack.c.l.b16 %v571
        %v592 = vunpack.c.h.b16 %v571
        %v593 = vunpack.c.l.b16 %v572
        %v594 = vunpack.c.h.b16 %v572
        %v595 = vunpack.c.l.b16 %v573
        %v596 = vunpack.c.h.b16 %v573
        %v597 = vunpack.c.l.b16 %v574
        %v598 = vunpack.c.h.b16 %v574
        %v599 = vpack.c.b16 %v583, %v583
        %v600 = vpack.c.b16 %v584, %v584
        %v601 = vpack.c.b16 %v585, %v585
        %v602 = vpack.c.b16 %v586, %v586
        %v603 = vpack.c.b16 %v587, %v587
        %v604 = vpack.c.b16 %v588, %v588
        %v605 = vpack.c.b16 %v589, %v589
        %v606 = vpack.c.b16 %v590, %v590
        %v607 = vpack.c.b16 %v591, %v591
        %v608 = vpack.c.b16 %v592, %v592
        %v609 = vpack.c.b16 %v593, %v593
        %v610 = vpack.c.b16 %v594, %v594
        %v611 = vpack.c.b16 %v595, %v595
        %v612 = vpack.c.b16 %v596, %v596
        %v613 = vpack.c.b16 %v597, %v597
        %v614 = vpack.c.b16 %v598, %v598
        %vm631 = vcmask 257024
        %632 = vst.msk [vmem:[%s351] sm:$0xf] %vm631, %v599
        %633 = vst.msk [vmem:[%s351 + $0x4] sm:$0xf] %vm631, %v600
        %634 = vst.msk [vmem:[%s351 + $0x8] sm:$0xf] %vm631, %v601
        %635 = vst.msk [vmem:[%s351 + $0xc] sm:$0xf] %vm631, %v602
        %636 = vst.msk [vmem:[%s351 + $0x10] sm:$0xf] %vm631, %v603
        %637 = vst.msk [vmem:[%s351 + $0x14] sm:$0xf] %vm631, %v604
        %638 = vst.msk [vmem:[%s351 + $0x18] sm:$0xf] %vm631, %v605
        %639 = vst.msk [vmem:[%s351 + $0x1c] sm:$0xf] %vm631, %v606
        %640 = vst.msk [vmem:[%s351 + $0x20] sm:$0xf] %vm631, %v607
        %641 = vst.msk [vmem:[%s351 + $0x24] sm:$0xf] %vm631, %v608
        %642 = vst.msk [vmem:[%s351 + $0x28] sm:$0xf] %vm631, %v609
        %643 = vst.msk [vmem:[%s351 + $0x2c] sm:$0xf] %vm631, %v610
        %644 = vst.msk [vmem:[%s351 + $0x30] sm:$0xf] %vm631, %v611
        %645 = vst.msk [vmem:[%s351 + $0x34] sm:$0xf] %vm631, %v612
        %646 = vst.msk [vmem:[%s351 + $0x38] sm:$0xf] %vm631, %v613
        %647 = vst.msk [vmem:[%s351 + $0x3c] sm:$0xf] %vm631, %v614
        %v648 = vpack.c.bf16 %v492, %v489
        %v649 = vpack.c.bf16 %v500, %v497
        %v650 = vpack.c.bf16 %v508, %v505
        %v651 = vpack.c.bf16 %v516, %v513
        %v652 = vpack.c.bf16 %v524, %v521
        %v653 = vpack.c.bf16 %v532, %v529
        %v654 = vpack.c.bf16 %v540, %v537
        %v655 = vpack.c.bf16 %v548, %v545
        %v664 = vunpack.c.l.b16 %v648
        %v665 = vunpack.c.h.b16 %v648
        %v666 = vunpack.c.l.b16 %v649
        %v667 = vunpack.c.h.b16 %v649
        %v668 = vunpack.c.l.b16 %v650
        %v669 = vunpack.c.h.b16 %v650
        %v670 = vunpack.c.l.b16 %v651
        %v671 = vunpack.c.h.b16 %v651
        %v672 = vunpack.c.l.b16 %v652
        %v673 = vunpack.c.h.b16 %v652
        %v674 = vunpack.c.l.b16 %v653
        %v675 = vunpack.c.h.b16 %v653
        %v676 = vunpack.c.l.b16 %v654
        %v677 = vunpack.c.h.b16 %v654
        %v678 = vunpack.c.l.b16 %v655
        %v679 = vunpack.c.h.b16 %v655
        %v680 = vpack.c.b16 %v664, %v664
        %v681 = vpack.c.b16 %v665, %v665
        %v682 = vpack.c.b16 %v666, %v666
        %v683 = vpack.c.b16 %v667, %v667
        %v684 = vpack.c.b16 %v668, %v668
        %v685 = vpack.c.b16 %v669, %v669
        %v686 = vpack.c.b16 %v670, %v670
        %v687 = vpack.c.b16 %v671, %v671
        %v688 = vpack.c.b16 %v672, %v672
        %v689 = vpack.c.b16 %v673, %v673
        %v690 = vpack.c.b16 %v674, %v674
        %v691 = vpack.c.b16 %v675, %v675
        %v692 = vpack.c.b16 %v676, %v676
        %v693 = vpack.c.b16 %v677, %v677
        %v694 = vpack.c.b16 %v678, %v678
        %v695 = vpack.c.b16 %v679, %v679
        %696 = vrot.lane.b32.xlu0 %v680, 96
        %v697 = vpop.permute.xlu0 %696
        %698 = vrot.lane.b32.xlu0 %v681, 96
        %v699 = vpop.permute.xlu0 %698
        %700 = vrot.lane.b32.xlu0 %v682, 96
        %v701 = vpop.permute.xlu0 %700
        %702 = vrot.lane.b32.xlu0 %v683, 96
        %v703 = vpop.permute.xlu0 %702
        %704 = vrot.lane.b32.xlu0 %v684, 96
        %v705 = vpop.permute.xlu0 %704
        %706 = vrot.lane.b32.xlu0 %v685, 96
        %v707 = vpop.permute.xlu0 %706
        %708 = vrot.lane.b32.xlu0 %v686, 96
        %v709 = vpop.permute.xlu0 %708
        %710 = vrot.lane.b32.xlu0 %v687, 96
        %v711 = vpop.permute.xlu0 %710
        %712 = vrot.lane.b32.xlu0 %v688, 96
        %v713 = vpop.permute.xlu0 %712
        %714 = vrot.lane.b32.xlu0 %v689, 96
        %v715 = vpop.permute.xlu0 %714
        %716 = vrot.lane.b32.xlu0 %v690, 96
        %v717 = vpop.permute.xlu0 %716
        %718 = vrot.lane.b32.xlu0 %v691, 96
        %v719 = vpop.permute.xlu0 %718
        %720 = vrot.lane.b32.xlu0 %v692, 96
        %v721 = vpop.permute.xlu0 %720
        %722 = vrot.lane.b32.xlu0 %v693, 96
        %v723 = vpop.permute.xlu0 %722
        %724 = vrot.lane.b32.xlu0 %v694, 96
        %v725 = vpop.permute.xlu0 %724
        %726 = vrot.lane.b32.xlu0 %v695, 96
        %v727 = vpop.permute.xlu0 %726
        %744 = vst.msk [vmem:[%s361] sm:$0xf] %vm631, %v697
        %745 = vst.msk [vmem:[%s361 + $0x4] sm:$0xf] %vm631, %v699
        %746 = vst.msk [vmem:[%s361 + $0x8] sm:$0xf] %vm631, %v701
        %747 = vst.msk [vmem:[%s361 + $0xc] sm:$0xf] %vm631, %v703
        %748 = vst.msk [vmem:[%s361 + $0x10] sm:$0xf] %vm631, %v705
        %749 = vst.msk [vmem:[%s361 + $0x14] sm:$0xf] %vm631, %v707
        %750 = vst.msk [vmem:[%s361 + $0x18] sm:$0xf] %vm631, %v709
        %751 = vst.msk [vmem:[%s361 + $0x1c] sm:$0xf] %vm631, %v711
        %752 = vst.msk [vmem:[%s361 + $0x20] sm:$0xf] %vm631, %v713
        %753 = vst.msk [vmem:[%s361 + $0x24] sm:$0xf] %vm631, %v715
        %754 = vst.msk [vmem:[%s361 + $0x28] sm:$0xf] %vm631, %v717
        %755 = vst.msk [vmem:[%s361 + $0x2c] sm:$0xf] %vm631, %v719
        %756 = vst.msk [vmem:[%s361 + $0x30] sm:$0xf] %vm631, %v721
        %757 = vst.msk [vmem:[%s361 + $0x34] sm:$0xf] %vm631, %v723
        %758 = vst.msk [vmem:[%s361 + $0x38] sm:$0xf] %vm631, %v725
        %759 = vst.msk [vmem:[%s361 + $0x3c] sm:$0xf] %vm631, %v727
        %760 = vrot.lane.b32.xlu0 %v680, 64
        %v761 = vpop.permute.xlu0 %760
        %762 = vrot.lane.b32.xlu0 %v681, 64
        %v763 = vpop.permute.xlu0 %762
        %764 = vrot.lane.b32.xlu0 %v682, 64
        %v765 = vpop.permute.xlu0 %764
        %766 = vrot.lane.b32.xlu0 %v683, 64
        %v767 = vpop.permute.xlu0 %766
        %768 = vrot.lane.b32.xlu0 %v684, 64
        %v769 = vpop.permute.xlu0 %768
        %770 = vrot.lane.b32.xlu0 %v685, 64
        %v771 = vpop.permute.xlu0 %770
        %772 = vrot.lane.b32.xlu0 %v686, 64
        %v773 = vpop.permute.xlu0 %772
        %774 = vrot.lane.b32.xlu0 %v687, 64
        %v775 = vpop.permute.xlu0 %774
        %776 = vrot.lane.b32.xlu0 %v688, 64
        %v777 = vpop.permute.xlu0 %776
        %778 = vrot.lane.b32.xlu0 %v689, 64
        %v779 = vpop.permute.xlu0 %778
        %780 = vrot.lane.b32.xlu0 %v690, 64
        %v781 = vpop.permute.xlu0 %780
        %782 = vrot.lane.b32.xlu0 %v691, 64
        %v783 = vpop.permute.xlu0 %782
        %784 = vrot.lane.b32.xlu0 %v692, 64
        %v785 = vpop.permute.xlu0 %784
        %786 = vrot.lane.b32.xlu0 %v693, 64
        %v787 = vpop.permute.xlu0 %786
        %788 = vrot.lane.b32.xlu0 %v694, 64
        %v789 = vpop.permute.xlu0 %788
        %790 = vrot.lane.b32.xlu0 %v695, 64
        %v791 = vpop.permute.xlu0 %790
        %808 = vst.msk [vmem:[%s371] sm:$0xf] %vm631, %v761
        %809 = vst.msk [vmem:[%s371 + $0x4] sm:$0xf] %vm631, %v763
        %810 = vst.msk [vmem:[%s371 + $0x8] sm:$0xf] %vm631, %v765
        %811 = vst.msk [vmem:[%s371 + $0xc] sm:$0xf] %vm631, %v767
        %812 = vst.msk [vmem:[%s371 + $0x10] sm:$0xf] %vm631, %v769
        %813 = vst.msk [vmem:[%s371 + $0x14] sm:$0xf] %vm631, %v771
        %814 = vst.msk [vmem:[%s371 + $0x18] sm:$0xf] %vm631, %v773
        %815 = vst.msk [vmem:[%s371 + $0x1c] sm:$0xf] %vm631, %v775
        %816 = vst.msk [vmem:[%s371 + $0x20] sm:$0xf] %vm631, %v777
        %817 = vst.msk [vmem:[%s371 + $0x24] sm:$0xf] %vm631, %v779
        %818 = vst.msk [vmem:[%s371 + $0x28] sm:$0xf] %vm631, %v781
        %819 = vst.msk [vmem:[%s371 + $0x2c] sm:$0xf] %vm631, %v783
        %820 = vst.msk [vmem:[%s371 + $0x30] sm:$0xf] %vm631, %v785
        %821 = vst.msk [vmem:[%s371 + $0x34] sm:$0xf] %vm631, %v787
        %822 = vst.msk [vmem:[%s371 + $0x38] sm:$0xf] %vm631, %v789
        %823 = vst.msk [vmem:[%s371 + $0x3c] sm:$0xf] %vm631, %v791
        %v832 = vunpack.c.l.b16 %v398
        %v833 = vunpack.c.h.b16 %v398
        %v834 = vunpack.c.l.b16 %v399
        %v835 = vunpack.c.h.b16 %v399
        %v836 = vunpack.c.l.b16 %v400
        %v837 = vunpack.c.h.b16 %v400
        %v838 = vunpack.c.l.b16 %v401
        %v839 = vunpack.c.h.b16 %v401
        %v840 = vunpack.c.l.b16 %v402
        %v841 = vunpack.c.h.b16 %v402
        %v842 = vunpack.c.l.b16 %v403
        %v843 = vunpack.c.h.b16 %v403
        %v844 = vunpack.c.l.b16 %v404
        %v845 = vunpack.c.h.b16 %v404
        %v846 = vunpack.c.l.b16 %v405
        %v847 = vunpack.c.h.b16 %v405
        %v848 = vpack.c.b16 %v832, %v832
        %v849 = vpack.c.b16 %v833, %v833
        %v850 = vpack.c.b16 %v834, %v834
        %v851 = vpack.c.b16 %v835, %v835
        %v852 = vpack.c.b16 %v836, %v836
        %v853 = vpack.c.b16 %v837, %v837
        %v854 = vpack.c.b16 %v838, %v838
        %v855 = vpack.c.b16 %v839, %v839
        %v856 = vpack.c.b16 %v840, %v840
        %v857 = vpack.c.b16 %v841, %v841
        %v858 = vpack.c.b16 %v842, %v842
        %v859 = vpack.c.b16 %v843, %v843
        %v860 = vpack.c.b16 %v844, %v844
        %v861 = vpack.c.b16 %v845, %v845
        %v862 = vpack.c.b16 %v846, %v846
        %v863 = vpack.c.b16 %v847, %v847
        %880 = vst.msk [vmem:[%s381] sm:$0xf] %vm631, %v848
        %881 = vst.msk [vmem:[%s381 + $0x4] sm:$0xf] %vm631, %v849
        %882 = vst.msk [vmem:[%s381 + $0x8] sm:$0xf] %vm631, %v850
        %883 = vst.msk [vmem:[%s381 + $0xc] sm:$0xf] %vm631, %v851
        %884 = vst.msk [vmem:[%s381 + $0x10] sm:$0xf] %vm631, %v852
        %885 = vst.msk [vmem:[%s381 + $0x14] sm:$0xf] %vm631, %v853
        %886 = vst.msk [vmem:[%s381 + $0x18] sm:$0xf] %vm631, %v854
        %887 = vst.msk [vmem:[%s381 + $0x1c] sm:$0xf] %vm631, %v855
        %888 = vst.msk [vmem:[%s381 + $0x20] sm:$0xf] %vm631, %v856
        %889 = vst.msk [vmem:[%s381 + $0x24] sm:$0xf] %vm631, %v857
        %890 = vst.msk [vmem:[%s381 + $0x28] sm:$0xf] %vm631, %v858
        %891 = vst.msk [vmem:[%s381 + $0x2c] sm:$0xf] %vm631, %v859
        %892 = vst.msk [vmem:[%s381 + $0x30] sm:$0xf] %vm631, %v860
        %893 = vst.msk [vmem:[%s381 + $0x34] sm:$0xf] %vm631, %v861
        %894 = vst.msk [vmem:[%s381 + $0x38] sm:$0xf] %vm631, %v862
        %895 = vst.msk [vmem:[%s381 + $0x3c] sm:$0xf] %vm631, %v863
        %s896 = smul.u32 16, %s27
        %p897 = scmp.lt.s32.totalorder %s26, 1
        %s898 = scalar_select %p897, %s26, 1
        %p899 = scmp.lt.s32.totalorder %s896, 31
        %s900 = scalar_select %p899, %s896, 31
        %s901 = smul.addr %s898, 32
        %s902 = sadd.s32 %s900, %s901
        %s903 = smul.addr %s902, 4
        %s904 = scalar_lea.vmem %s3, %s903
        %s905 = smul.u32 16, %s27
        %p906 = scmp.lt.s32.totalorder %s26, 1
        %s907 = scalar_select %p906, %s26, 1
        %p908 = scmp.lt.s32.totalorder %s905, 31
        %s909 = scalar_select %p908, %s905, 31
        %s910 = smul.addr %s907, 32
        %s911 = sadd.s32 %s909, %s910
        %s912 = smul.addr %s911, 4
        %s913 = scalar_lea.vmem %s4, %s912
        %s914 = smul.u32 16, %s27
        %p915 = scmp.lt.s32.totalorder %s26, 1
        %s916 = scalar_select %p915, %s26, 1
        %p917 = scmp.lt.s32.totalorder %s914, 31
        %s918 = scalar_select %p917, %s914, 31
        %s919 = smul.addr %s916, 32
        %s920 = sadd.s32 %s918, %s919
        %s921 = smul.addr %s920, 4
        %s922 = scalar_lea.vmem %s5, %s921
        %s923 = smul.u32 16, %s27
        %p924 = scmp.lt.s32.totalorder %s26, 1
        %s925 = scalar_select %p924, %s26, 1
        %p926 = scmp.lt.s32.totalorder %s923, 31
        %s927 = scalar_select %p926, %s923, 31
        %s928 = smul.addr %s925, 32
        %s929 = sadd.s32 %s927, %s928
        %s930 = smul.addr %s929, 4
        %s931 = scalar_lea.vmem %s6, %s930
        // Predicated region
        $region41: #{tpu_custom_call.1} parent=31 // pred_check
          %p932 = pneg %p124
        $region42: #{tpu_custom_call.1} parent=31 // pred_check_branch
          %934 = sbr.rel (%p932) target = $region44
        $region43: #{tpu_custom_call.1} parent=31 // pred_region
          %s935 = smul.u32 16, %s27
        $region44: #{tpu_custom_call.1} parent=31 // pred_fallthru
          _
        // Predicated region
        $region45: #{tpu_custom_call.1} parent=31 // pred_check
          %p936 = pneg %p152
        $region46: #{tpu_custom_call.1} parent=31 // pred_check_branch
          %938 = sbr.rel (%p936) target = $region48
        $region47: #{tpu_custom_call.1} parent=31 // pred_region
          %s939 = smul.u32 16, %s27
        $region48: #{tpu_custom_call.1} parent=31 // pred_fallthru
          _
        // Predicated region
        $region49: #{tpu_custom_call.1} parent=31 // pred_check
          %p940 = pneg %p180
        $region50: #{tpu_custom_call.1} parent=31 // pred_check_branch
          %942 = sbr.rel (%p940) target = $region52
        $region51: #{tpu_custom_call.1} parent=31 // pred_region
          %s943 = smul.u32 16, %s27
        $region52: #{tpu_custom_call.1} parent=31 // pred_fallthru
          _
        // Predicated region
        $region53: #{tpu_custom_call.1} parent=31 // pred_check
          %p944 = pneg %p208
        $region54: #{tpu_custom_call.1} parent=31 // pred_check_branch
          %946 = sbr.rel (%p944) target = $region56
        $region55: #{tpu_custom_call.1} parent=31 // pred_region
          %s947 = smul.u32 16, %s27
        $region56: #{tpu_custom_call.1} parent=31 // pred_fallthru
          _
      $region32: #{tpu_custom_call.1} parent=5 // pred_fallthru
        _
      %p948 = scmp.le.s32.totalorder 2, %s17
      // Predicated region
      $region57: #{tpu_custom_call.1} parent=5 // pred_check
        %p949 = pneg %p948
      $region58: #{tpu_custom_call.1} parent=5 // pred_check_branch
        %951 = sbr.rel (%p949) target = $region60
      $region59: #{tpu_custom_call.1} parent=5 // pred_region
        %s952 = ssub.s32 %s17, 2
        // Predicated region
        $region61: #{tpu_custom_call.1} parent=59 // pred_check
          %p953 = pneg %p130
        $region62: #{tpu_custom_call.1} parent=59 // pred_check_branch
          %955 = sbr.rel (%p953) target = $region64
        $region63: #{tpu_custom_call.1} parent=59 // pred_region
          %s956 = smul.u32 16, %s29
          %p957 = scmp.lt.s32.totalorder %s28, 1
          %s958 = scalar_select %p957, %s28, 1
          %p959 = scmp.lt.s32.totalorder %s956, 31
          %s960 = scalar_select %p959, %s956, 31
          %s961 = smul.addr %s958, 32
          %s962 = sadd.s32 %s960, %s961
          %s963 = smul.addr %s962, 4
          %s964 = scalar_lea.vmem %s3, %s963
        $region64: #{tpu_custom_call.1} parent=59 // pred_fallthru
          _
        // Predicated region
        $region65: #{tpu_custom_call.1} parent=59 // pred_check
          %p965 = pneg %p158
        $region66: #{tpu_custom_call.1} parent=59 // pred_check_branch
          %967 = sbr.rel (%p965) target = $region68
        $region67: #{tpu_custom_call.1} parent=59 // pred_region
          %s968 = smul.u32 16, %s29
          %p969 = scmp.lt.s32.totalorder %s28, 1
          %s970 = scalar_select %p969, %s28, 1
          %p971 = scmp.lt.s32.totalorder %s968, 31
          %s972 = scalar_select %p971, %s968, 31
          %s973 = smul.addr %s970, 32
          %s974 = sadd.s32 %s972, %s973
          %s975 = smul.addr %s974, 4
          %s976 = scalar_lea.vmem %s4, %s975
        $region68: #{tpu_custom_call.1} parent=59 // pred_fallthru
          _
        // Predicated region
        $region69: #{tpu_custom_call.1} parent=59 // pred_check
          %p977 = pneg %p186
        $region70: #{tpu_custom_call.1} parent=59 // pred_check_branch
          %979 = sbr.rel (%p977) target = $region72
        $region71: #{tpu_custom_call.1} parent=59 // pred_region
          %s980 = smul.u32 16, %s29
          %p981 = scmp.lt.s32.totalorder %s28, 1
          %s982 = scalar_select %p981, %s28, 1
          %p983 = scmp.lt.s32.totalorder %s980, 31
          %s984 = scalar_select %p983, %s980, 31
          %s985 = smul.addr %s982, 32
          %s986 = sadd.s32 %s984, %s985
          %s987 = smul.addr %s986, 4
          %s988 = scalar_lea.vmem %s5, %s987
        $region72: #{tpu_custom_call.1} parent=59 // pred_fallthru
          _
        // Predicated region
        $region73: #{tpu_custom_call.1} parent=59 // pred_check
          %p989 = pneg %p214
        $region74: #{tpu_custom_call.1} parent=59 // pred_check_branch
          %991 = sbr.rel (%p989) target = $region76
        $region75: #{tpu_custom_call.1} parent=59 // pred_region
          %s992 = smul.u32 16, %s29
          %p993 = scmp.lt.s32.totalorder %s28, 1
          %s994 = scalar_select %p993, %s28, 1
          %p995 = scmp.lt.s32.totalorder %s992, 31
          %s996 = scalar_select %p995, %s992, 31
          %s997 = smul.addr %s994, 32
          %s998 = sadd.s32 %s996, %s997
          %s999 = smul.addr %s998, 4
          %s1000 = scalar_lea.vmem %s6, %s999
        $region76: #{tpu_custom_call.1} parent=59 // pred_fallthru
          _
      $region60: #{tpu_custom_call.1} parent=5 // pred_fallthru
        _
    $region6: #{tpu_custom_call.1} parent=1 // loop_footer
      %s21 = sadd.s32 1, %s17
    $region7: #{tpu_custom_call.1} parent=1 // loop_footer_branch
      %16 = sbr.rel target = $region3
    $region8: #{tpu_custom_call.1} parent=1 // loop_exit
      _
    %1001 = vsyncpa [#allocation3], 1
    %s1002 = scalar_lea.sflag [#allocation3], 1
    %1003 = vsyncpa %s1002, 1
    %1004 = vsyncpa [#allocation5], 1

</llo_original>
